<compile_context>
chip_gen: v5e
topology: v5e:2x2
jax: 0.10.0
libtpu: 0.0.40
codegen_flags: <defaults>
</compile_context>

<pallas_src>
import functools
import math

import jax
import jax.numpy as jnp
from jax.experimental import pallas as pl
from jax.experimental.pallas import tpu as pltpu


def _round_up(n, m):
    return ((n + m - 1) // m) * m


# ----------------------------- Pallas kernel --------------------------------

def lstm_fc_fused_kernel(x_ref, wg_ref, bg_ref, wfc_ref, bfc_ref, o_ref, *, hidden_size):
    # x_ref:  (TB, D_pad) bf16      wg_ref: (D_pad, 3H) bf16   bg_ref: (1, 3H) f32
    # wfc_ref:(H, C_pad)  bf16      bfc_ref:(1, C_pad)  f32    o_ref:  (TB, C_pad) f32
    H = hidden_size

    # Single wide gate matmul for the three live gates [i, g, o] (f32 accumulation).
    gates = jnp.dot(x_ref[...], wg_ref[...],
                    preferred_element_type=jnp.float32) + bg_ref[...]

    i_g = jax.nn.sigmoid(gates[:, 0 * H:1 * H])   # input gate
    g_g = jnp.tanh(gates[:, 1 * H:2 * H])         # cell candidate
    o_g = jax.nn.sigmoid(gates[:, 2 * H:3 * H])   # output gate

    c1 = i_g * g_g                                # c1 = f*c0 + i*g with c0 == 0
    h1 = o_g * jnp.tanh(c1)                       # (TB, H) == lstm_out[:, -1, :]

    # Dropout(p=0.25) is identity in eval mode; classifier fused, lane-dense (C_pad=128) store.
    o_ref[...] = jnp.dot(h1.astype(wfc_ref.dtype), wfc_ref[...],
                         preferred_element_type=jnp.float32) + bfc_ref[...]


# ----------------------------- wrapper ---------------------------------------

def lstm_forward(x, kp, *, hidden_size, num_classes, batch_tile=128):
    B, D = x.shape
    H = hidden_size
    D_pad, G = kp["w_gates"].shape        # (256, 3H)
    _, C_pad = kp["fc_w"].shape           # (H, 128)
    assert G == 3 * H

    # Choose batch tile: single tile for small B (padded to sublane multiple of 8),
    # otherwise tile the (padded) batch and shard tiles across cores.
    b_min = _round_up(B, 8)
    if b_min <= batch_tile:
        tb, Bp = b_min, b_min
    else:
        tb, Bp = batch_tile, _round_up(B, batch_tile)
    grid = (Bp // tb,)

    # Pad batch and contraction dim, cast activations to bf16 (weights already bf16).
    x_pad = jnp.pad(x, ((0, Bp - B), (0, D_pad - D))).astype(jnp.bfloat16)

    flops = 2 * Bp * D_pad * G + 2 * Bp * H * C_pad
    transcendentals = 4 * Bp * H
    bytes_accessed = (x_pad.size * 2 + kp["w_gates"].size * 2 + kp["b_gates"].size * 4
                      + kp["fc_w"].size * 2 + kp["fc_b"].size * 4 + Bp * C_pad * 4)

    out = pl.pallas_call(
        functools.partial(lstm_fc_fused_kernel, hidden_size=H),
        out_shape=jax.ShapeDtypeStruct((Bp, C_pad), jnp.float32),
        grid=grid,
        in_specs=[
            pl.BlockSpec((tb, D_pad), lambda i: (i, 0)),     # x: tiled over batch
            pl.BlockSpec((D_pad, G), lambda i: (0, 0)),      # gate weights: resident
            pl.BlockSpec((1, G), lambda i: (0, 0)),          # gate bias: resident
            pl.BlockSpec((H, C_pad), lambda i: (0, 0)),      # fc weights: resident
            pl.BlockSpec((1, C_pad), lambda i: (0, 0)),      # fc bias: resident
        ],
        out_specs=pl.BlockSpec((tb, C_pad), lambda i: (i, 0)),
        compiler_params=pltpu.CompilerParams(dimension_semantics=("parallel",)),
        cost_estimate=pl.CostEstimate(flops=flops,
                                      transcendentals=transcendentals,
                                      bytes_accessed=bytes_accessed),
    )(x_pad, kp["w_gates"], kp["b_gates"], kp["fc_w"], kp["fc_b"])

    return out[:B, :num_classes]


# ----------------------------- deterministic params --------------------------

def init_torch_params(key, input_size, hidden_size, num_classes):
    # Mirrors PyTorch's LSTM / Linear parameter layout and U(-1/sqrt(H), 1/sqrt(H)) init.
    ks = jax.random.split(key, 6)
    s = 1.0 / math.sqrt(hidden_size)

    def u(k, shape):
        return jax.random.uniform(k, shape, jnp.float32, -s, s)

    return {
        "weight_ih_l0": u(ks[0], (4 * hidden_size, input_size)),
        "weight_hh_l0": u(ks[1], (4 * hidden_size, hidden_size)),  # h0 == 0 -> no effect
        "bias_ih_l0": u(ks[2], (4 * hidden_size,)),
        "bias_hh_l0": u(ks[3], (4 * hidden_size,)),
        "fc_weight": u(ks[4], (num_classes, hidden_size)),
        "fc_bias": u(ks[5], (num_classes,)),
    }


def to_kernel_params(tp, *, hidden_size, num_classes):
    H = hidden_size
    D = tp["weight_ih_l0"].shape[1]
    D_pad = _round_up(D, 128)      # 225 -> 256, aligned contraction tiles
    C_pad = 128                    # lane-dense classifier output

    w_ih = tp["weight_ih_l0"]                                  # (4H, D), rows [i, f, g, o]
    b = tp["bias_ih_l0"] + tp["bias_hh_l0"]                    # (4H,)

    # Drop forget-gate rows (they multiply c0 == 0); keep [i, g, o].
    keep = jnp.concatenate([w_ih[0 * H:1 * H], w_ih[2 * H:3 * H], w_ih[3 * H:4 * H]], axis=0)
    b_keep = jnp.concatenate([b[0 * H:1 * H], b[2 * H:3 * H], b[3 * H:4 * H]], axis=0)

    w_gates = jnp.pad(keep.T, ((0, D_pad - D), (0, 0))).astype(jnp.bfloat16)   # (D_pad, 3H)
    b_gates = b_keep.reshape(1, -1).astype(jnp.float32)                        # (1, 3H)

    fc_w = jnp.pad(tp["fc_weight"].T, ((0, 0), (0, C_pad - num_classes))
                   ).astype(jnp.bfloat16)                                      # (H, C_pad)
    fc_b = jnp.pad(tp["fc_bias"], (0, C_pad - num_classes)
                   ).reshape(1, -1).astype(jnp.float32)                        # (1, C_pad)

    return {"w_gates": w_gates, "b_gates": b_gates, "fc_w": fc_w, "fc_b": fc_b}


# ----------------------------- reference (pure JAX) ---------------------------

def reference_forward(x, kp, *, hidden_size, num_classes):
    H = hidden_size
    D = x.shape[1]
    wg = kp["w_gates"].astype(jnp.float32)[:D]     # un-pad contraction dim
    gates = x.astype(jnp.bfloat16).astype(jnp.float32) @ wg + kp["b_gates"]
    i_g = jax.nn.sigmoid(gates[:, 0 * H:1 * H])
    g_g = jnp.tanh(gates[:, 1 * H:2 * H])
    o_g = jax.nn.sigmoid(gates[:, 2 * H:3 * H])
    h1 = o_g * jnp.tanh(i_g * g_g)
    out = h1.astype(jnp.bfloat16).astype(jnp.float32) @ kp["fc_w"].astype(jnp.float32) + kp["fc_b"]
    return out[:, :num_classes]


# ----------------------------- main -------------------------------------------

if __name__ == "__main__":
    INPUT_SIZE, HIDDEN, NUM_CLASSES = 225, 64, 3

    key = jax.random.PRNGKey(0)
    pkey, xkey1, xkey2 = jax.random.split(key, 3)

    torch_params = init_torch_params(pkey, INPUT_SIZE, HIDDEN, NUM_CLASSES)
    kparams = to_kernel_params(torch_params, hidden_size=HIDDEN, num_classes=NUM_CLASSES)

    # Small single-tile case (module input shape: (batch, 225)).
    x_small = jax.random.normal(xkey1, (16, INPUT_SIZE), jnp.float32)
    out_small = jax.block_until_ready(
        lstm_forward(x_small, kparams, hidden_size=HIDDEN, num_classes=NUM_CLASSES))
    assert out_small.shape == (16, NUM_CLASSES), out_small.shape
    assert bool(jnp.all(jnp.isfinite(out_small)))
    ref_small = reference_forward(x_small, kparams, hidden_size=HIDDEN, num_classes=NUM_CLASSES)
    assert bool(jnp.max(jnp.abs(out_small - ref_small)) < 5e-3)

    # Batched case exercising the batch grid (2 tiles of 128) + parallel semantics.
    x_big = jax.random.normal(xkey2, (256, INPUT_SIZE), jnp.float32)
    out_big = jax.block_until_ready(
        lstm_forward(x_big, kparams, hidden_size=HIDDEN, num_classes=NUM_CLASSES))
    assert out_big.shape == (256, NUM_CLASSES), out_big.shape
    assert bool(jnp.all(jnp.isfinite(out_big)))
    ref_big = reference_forward(x_big, kparams, hidden_size=HIDDEN, num_classes=NUM_CLASSES)
    assert bool(jnp.max(jnp.abs(out_big - ref_big)) < 5e-3)

    print("KERNEL_OK")
</pallas_src>

<mosaic_0001>
module attributes {stable_mosaic.version = 11 : i64} {
  func.func @lstm_fc_fused_kernel(%arg0: i32, %arg1: memref<16x256xbf16, #tpu.memory_space<vmem>>, %arg2: memref<256x192xbf16, #tpu.memory_space<vmem>>, %arg3: memref<1x192xf32, #tpu.memory_space<vmem>>, %arg4: memref<64x128xbf16, #tpu.memory_space<vmem>>, %arg5: memref<1x128xf32, #tpu.memory_space<vmem>>, %arg6: memref<16x128xf32, #tpu.memory_space<vmem>>) attributes {dimension_semantics = [#tpu.dimension_semantics<parallel>], iteration_bounds = array<i64: 1>, scalar_prefetch = 0 : i64, scratch_operands = 0 : i64, tpu.core_type = #tpu.core_type<tc>, window_params = [{transform_indices = @transform_0, window_bounds = array<i64: 16, 256>}, {pipeline_mode = #tpu.pipeline_mode<synchronous>, transform_indices = @transform_1, window_bounds = array<i64: 256, 192>}, {pipeline_mode = #tpu.pipeline_mode<synchronous>, transform_indices = @transform_2, window_bounds = array<i64: 1, 192>}, {pipeline_mode = #tpu.pipeline_mode<synchronous>, transform_indices = @transform_3, window_bounds = array<i64: 64, 128>}, {pipeline_mode = #tpu.pipeline_mode<synchronous>, transform_indices = @transform_4, window_bounds = array<i64: 1, 128>}, {transform_indices = @transform_5, window_bounds = array<i64: 16, 128>}]} {
    %c0 = arith.constant 0 : index
    %c0_0 = arith.constant 0 : index
    %0 = vector.load %arg1[%c0, %c0_0] : memref<16x256xbf16, #tpu.memory_space<vmem>>, vector<16x256xbf16>
    %c0_1 = arith.constant 0 : index
    %c0_2 = arith.constant 0 : index
    %1 = vector.load %arg2[%c0_1, %c0_2] : memref<256x192xbf16, #tpu.memory_space<vmem>>, vector<256x192xbf16>
    %cst = arith.constant dense<0.000000e+00> : vector<16x192xf32>
    %2 = tpu.matmul %0, %1, %cst {dimension_numbers = #tpu.dot_dimension_numbers<[1], [0], [0], [1], [0, 0, 1, 1], [], []>} : vector<16x256xbf16>, vector<256x192xbf16>, vector<16x192xf32> -> vector<16x192xf32>
    %c0_3 = arith.constant 0 : index
    %c0_4 = arith.constant 0 : index
    %3 = vector.load %arg3[%c0_3, %c0_4] : memref<1x192xf32, #tpu.memory_space<vmem>>, vector<1x192xf32>
    %4 = vector.broadcast %3 : vector<1x192xf32> to vector<16x192xf32>
    %5 = arith.addf %2, %4 : vector<16x192xf32>
    %6 = vector.extract_strided_slice %5 {offsets = [0, 0], sizes = [16, 64], strides = [1, 1]} : vector<16x192xf32> to vector<16x64xf32>
    %7 = arith.negf %6 : vector<16x64xf32>
    %8 = math.exp %7 : vector<16x64xf32>
    %cst_5 = arith.constant 1.000000e+00 : f32
    %9 = vector.broadcast %cst_5 : f32 to vector<16x64xf32>
    %10 = arith.addf %9, %8 : vector<16x64xf32>
    %11 = arith.divf %9, %10 : vector<16x64xf32>
    %12 = vector.extract_strided_slice %5 {offsets = [0, 64], sizes = [16, 64], strides = [1, 1]} : vector<16x192xf32> to vector<16x64xf32>
    %13 = math.tanh %12 : vector<16x64xf32>
    %14 = vector.extract_strided_slice %5 {offsets = [0, 128], sizes = [16, 64], strides = [1, 1]} : vector<16x192xf32> to vector<16x64xf32>
    %15 = arith.negf %14 : vector<16x64xf32>
    %16 = math.exp %15 : vector<16x64xf32>
    %cst_6 = arith.constant 1.000000e+00 : f32
    %17 = vector.broadcast %cst_6 : f32 to vector<16x64xf32>
    %18 = arith.addf %17, %16 : vector<16x64xf32>
    %19 = arith.divf %17, %18 : vector<16x64xf32>
    %20 = arith.mulf %11, %13 : vector<16x64xf32>
    %21 = math.tanh %20 : vector<16x64xf32>
    %22 = arith.mulf %19, %21 : vector<16x64xf32>
    %23 = arith.truncf %22 : vector<16x64xf32> to vector<16x64xbf16>
    %c0_7 = arith.constant 0 : index
    %c0_8 = arith.constant 0 : index
    %24 = vector.load %arg4[%c0_7, %c0_8] : memref<64x128xbf16, #tpu.memory_space<vmem>>, vector<64x128xbf16>
    %cst_9 = arith.constant dense<0.000000e+00> : vector<16x128xf32>
    %25 = tpu.matmul %23, %24, %cst_9 {dimension_numbers = #tpu.dot_dimension_numbers<[1], [0], [0], [1], [0, 0, 1, 1], [], []>} : vector<16x64xbf16>, vector<64x128xbf16>, vector<16x128xf32> -> vector<16x128xf32>
    %c0_10 = arith.constant 0 : index
    %c0_11 = arith.constant 0 : index
    %26 = vector.load %arg5[%c0_10, %c0_11] : memref<1x128xf32, #tpu.memory_space<vmem>>, vector<1x128xf32>
    %27 = vector.broadcast %26 : vector<1x128xf32> to vector<16x128xf32>
    %28 = arith.addf %25, %27 : vector<16x128xf32>
    %c0_12 = arith.constant 0 : index
    %c0_13 = arith.constant 0 : index
    %29 = vector.load %arg6[%c0_12, %c0_13] : memref<16x128xf32, #tpu.memory_space<vmem>>, vector<16x128xf32>
    tpu.vector_store %arg6[%c0_12, %c0_13], %28 {strides = array<i32>} : memref<16x128xf32, #tpu.memory_space<vmem>>, vector<16x128xf32>,
    return
  }
  func.func @transform_0(%arg0: i32) -> (i32, i32) {
    %c0_i32 = arith.constant 0 : i32
    %c0_i32_0 = arith.constant 0 : i32
    return %arg0, %c0_i32 : i32, i32
  }
  func.func @transform_1(%arg0: i32) -> (i32, i32) {
    %c0_i32 = arith.constant 0 : i32
    %c0_i32_0 = arith.constant 0 : i32
    %c0_i32_1 = arith.constant 0 : i32
    return %c0_i32, %c0_i32_0 : i32, i32
  }
  func.func @transform_2(%arg0: i32) -> (i32, i32) {
    %c0_i32 = arith.constant 0 : i32
    %c0_i32_0 = arith.constant 0 : i32
    %c0_i32_1 = arith.constant 0 : i32
    return %c0_i32, %c0_i32_0 : i32, i32
  }
  func.func @transform_3(%arg0: i32) -> (i32, i32) {
    %c0_i32 = arith.constant 0 : i32
    %c0_i32_0 = arith.constant 0 : i32
    %c0_i32_1 = arith.constant 0 : i32
    return %c0_i32, %c0_i32_0 : i32, i32
  }
  func.func @transform_4(%arg0: i32) -> (i32, i32) {
    %c0_i32 = arith.constant 0 : i32
    %c0_i32_0 = arith.constant 0 : i32
    %c0_i32_1 = arith.constant 0 : i32
    return %c0_i32, %c0_i32_0 : i32, i32
  }
  func.func @transform_5(%arg0: i32) -> (i32, i32) {
    %c0_i32 = arith.constant 0 : i32
    %c0_i32_0 = arith.constant 0 : i32
    return %arg0, %c0_i32 : i32, i32
  }
}

</mosaic_0001>

<llo_original>
// kernel: tpu_custom_call.1
$region0: #{tpu_custom_call.1}
  #allocation0 [shape = 'u32[]', space=smem, size = 0x4, offset = 0x4, fixed_abs, tag = 'smem constant byte address 0x4 - core index']
  #allocation1 [shape = 'u32[72,128]{1,0:T(1,128)}', space=vmem, size = 0x9000, scoped, tag = 'internal scratch']
  %s0 = inlined_call_operand.vmem [shape: bf16[16,256], index: 0, kind: input, shape index: {}]
  %s1 = inlined_call_operand.vmem [shape: bf16[256,192], index: 1, kind: input, shape index: {}]
  %s2 = inlined_call_operand.vmem [shape: f32[1,192], index: 2, kind: input, shape index: {}]
  %s3 = inlined_call_operand.vmem [shape: bf16[64,128], index: 3, kind: input, shape index: {}]
  %s4 = inlined_call_operand.vmem [shape: f32[1,128], index: 4, kind: input, shape index: {}]
  %s5 = inlined_call_operand.hbm [shape: f32[16,128], index: 5, kind: output, shape index: {}]
  %s6 = sld [smem:[#allocation0]]
  $region30: #{tpu_custom_call.1} parent=0
    _
  %s8 = ssub.s32 1, %s6
  %s9 = scalar_select 0, %s8, %s6
  $region1: #{tpu_custom_call.1} parent=0
    #allocation2 [shape = 'u8[8192]{0}', space=vmem, size = 0x2000, scoped, tag = 'output window, operand 0, single buffered']
    #allocation3 [shape = 's32[1]{0}', space=sflag, size = 0x4, scoped, tag = 'scoped memory for tpu_custom_call.1']
    %10 = vsyncpa [#allocation3], 0
    // Predicated region
    $region2: #{tpu_custom_call.1} parent=1 // pred_check
      _
    $region3: #{tpu_custom_call.1} parent=1 // pred_check_branch
      %12 = sbr.rel (0) target = $region5
    $region4: #{tpu_custom_call.1} parent=1 // pred_region
      _
    $region5: #{tpu_custom_call.1} parent=1 // pred_fallthru
      _
    // Predicated region
    $region6: #{tpu_custom_call.1} parent=1 // pred_check
      _
    $region7: #{tpu_custom_call.1} parent=1 // pred_check_branch
      %14 = sbr.rel (0) target = $region9
    $region8: #{tpu_custom_call.1} parent=1 // pred_region
      _
    $region9: #{tpu_custom_call.1} parent=1 // pred_fallthru
      _
    // Predicated region
    $region10: #{tpu_custom_call.1} parent=1 // pred_check
      _
    $region11: #{tpu_custom_call.1} parent=1 // pred_check_branch
      %16 = sbr.rel (0) target = $region13
    $region12: #{tpu_custom_call.1} parent=1 // pred_region
      _
    $region13: #{tpu_custom_call.1} parent=1 // pred_fallthru
      _
    // Predicated region
    $region14: #{tpu_custom_call.1} parent=1 // pred_check
      _
    $region15: #{tpu_custom_call.1} parent=1 // pred_check_branch
      %18 = sbr.rel (0) target = $region17
    $region16: #{tpu_custom_call.1} parent=1 // pred_region
      _
    $region17: #{tpu_custom_call.1} parent=1 // pred_fallthru
      _
    // Predicated region
    $region18: #{tpu_custom_call.1} parent=1 // pred_check
      _
    $region19: #{tpu_custom_call.1} parent=1 // pred_check_branch
      %20 = sbr.rel (0) target = $region21
    $region20: #{tpu_custom_call.1} parent=1 // pred_region
      _
    $region21: #{tpu_custom_call.1} parent=1 // pred_fallthru
      _
    %v22 = vld [vmem:[%s0] sm:$0xff]
    %v23 = vld [vmem:[%s0 + $0x8] sm:$0xff]
    %v24 = vld [vmem:[%s1] sm:$0xff]
    %v25 = vld [vmem:[%s1 + $0x8] sm:$0xff]
    %v26 = vld [vmem:[%s1 + $0x10] sm:$0xff]
    %v27 = vld [vmem:[%s1 + $0x18] sm:$0xff]
    %v28 = vld [vmem:[%s1 + $0x20] sm:$0xff]
    %v29 = vld [vmem:[%s1 + $0x28] sm:$0xff]
    %v30 = vld [vmem:[%s1 + $0x30] sm:$0xff]
    %v31 = vld [vmem:[%s1 + $0x38] sm:$0xff]
    %v32 = vld [vmem:[%s1 + $0x40] sm:$0xff]
    %v33 = vld [vmem:[%s1 + $0x48] sm:$0xff]
    %v34 = vld [vmem:[%s1 + $0x50] sm:$0xff]
    %v35 = vld [vmem:[%s1 + $0x58] sm:$0xff]
    %v36 = vld [vmem:[%s1 + $0x60] sm:$0xff]
    %v37 = vld [vmem:[%s1 + $0x68] sm:$0xff]
    %v38 = vld [vmem:[%s1 + $0x70] sm:$0xff]
    %v39 = vld [vmem:[%s1 + $0x78] sm:$0xff]
    %v40 = vld [vmem:[%s1 + $0x80] sm:$0xff]
    %v41 = vld [vmem:[%s1 + $0x88] sm:$0xff]
    %v42 = vld [vmem:[%s1 + $0x90] sm:$0xff]
    %v43 = vld [vmem:[%s1 + $0x98] sm:$0xff]
    %v44 = vld [vmem:[%s1 + $0xa0] sm:$0xff]
    %v45 = vld [vmem:[%s1 + $0xa8] sm:$0xff]
    %v46 = vld [vmem:[%s1 + $0xb0] sm:$0xff]
    %v47 = vld [vmem:[%s1 + $0xb8] sm:$0xff]
    %v48 = vld [vmem:[%s1 + $0xc0] sm:$0xff]
    %v49 = vld [vmem:[%s1 + $0xc8] sm:$0xff]
    %v50 = vld [vmem:[%s1 + $0xd0] sm:$0xff]
    %v51 = vld [vmem:[%s1 + $0xd8] sm:$0xff]
    %v52 = vld [vmem:[%s1 + $0xe0] sm:$0xff]
    %v53 = vld [vmem:[%s1 + $0xe8] sm:$0xff]
    %v54 = vld [vmem:[%s1 + $0xf0] sm:$0xff]
    %v55 = vld [vmem:[%s1 + $0xf8] sm:$0xff]
    %v56 = vld [vmem:[%s2] sm:$0x3]
    %v58 = vperm.slane %v56, 0
    %v59 = vperm.slane %v56, 1
    %v64 = vunpack.c.l.b16 %v22
    %v65 = vunpack.c.h.b16 %v22
    %v66 = vunpack.c.l.b16 %v23
    %v67 = vunpack.c.h.b16 %v23
    %v68 = vpack.c.b16 %v66, %v64
    %v69 = vpack.c.b16 %v67, %v65
    %v104 = vunpack.c.l.b16 %v24
    %v105 = vunpack.c.h.b16 %v24
    %v106 = vunpack.c.l.b16 %v25
    %v107 = vunpack.c.h.b16 %v25
    %v108 = vunpack.c.l.b16 %v26
    %v109 = vunpack.c.h.b16 %v26
    %v110 = vunpack.c.l.b16 %v27
    %v111 = vunpack.c.h.b16 %v27
    %v112 = vunpack.c.l.b16 %v28
    %v113 = vunpack.c.h.b16 %v28
    %v114 = vunpack.c.l.b16 %v29
    %v115 = vunpack.c.h.b16 %v29
    %v116 = vunpack.c.l.b16 %v30
    %v117 = vunpack.c.h.b16 %v30
    %v118 = vunpack.c.l.b16 %v31
    %v119 = vunpack.c.h.b16 %v31
    %v120 = vunpack.c.l.b16 %v32
    %v121 = vunpack.c.h.b16 %v32
    %v122 = vunpack.c.l.b16 %v33
    %v123 = vunpack.c.h.b16 %v33
    %v124 = vunpack.c.l.b16 %v34
    %v125 = vunpack.c.h.b16 %v34
    %v126 = vunpack.c.l.b16 %v35
    %v127 = vunpack.c.h.b16 %v35
    %v128 = vunpack.c.l.b16 %v36
    %v129 = vunpack.c.h.b16 %v36
    %v130 = vunpack.c.l.b16 %v37
    %v131 = vunpack.c.h.b16 %v37
    %v132 = vunpack.c.l.b16 %v38
    %v133 = vunpack.c.h.b16 %v38
    %v134 = vunpack.c.l.b16 %v39
    %v135 = vunpack.c.h.b16 %v39
    %v136 = vunpack.c.l.b16 %v40
    %v137 = vunpack.c.h.b16 %v40
    %v138 = vunpack.c.l.b16 %v41
    %v139 = vunpack.c.h.b16 %v41
    %v140 = vunpack.c.l.b16 %v42
    %v141 = vunpack.c.h.b16 %v42
    %v142 = vunpack.c.l.b16 %v43
    %v143 = vunpack.c.h.b16 %v43
    %v144 = vunpack.c.l.b16 %v44
    %v145 = vunpack.c.h.b16 %v44
    %v146 = vunpack.c.l.b16 %v45
    %v147 = vunpack.c.h.b16 %v45
    %v148 = vunpack.c.l.b16 %v46
    %v149 = vunpack.c.h.b16 %v46
    %v150 = vunpack.c.l.b16 %v47
    %v151 = vunpack.c.h.b16 %v47
    %v152 = vunpack.c.l.b16 %v48
    %v153 = vunpack.c.h.b16 %v48
    %v154 = vunpack.c.l.b16 %v49
    %v155 = vunpack.c.h.b16 %v49
    %v156 = vunpack.c.l.b16 %v50
    %v157 = vunpack.c.h.b16 %v50
    %v158 = vunpack.c.l.b16 %v51
    %v159 = vunpack.c.h.b16 %v51
    %v160 = vunpack.c.l.b16 %v52
    %v161 = vunpack.c.h.b16 %v52
    %v162 = vunpack.c.l.b16 %v53
    %v163 = vunpack.c.h.b16 %v53
    %v164 = vunpack.c.l.b16 %v54
    %v165 = vunpack.c.h.b16 %v54
    %v166 = vunpack.c.l.b16 %v55
    %v167 = vunpack.c.h.b16 %v55
    %v168 = vpack.c.b16 %v106, %v104
    %v169 = vpack.c.b16 %v107, %v105
    %v170 = vpack.c.b16 %v110, %v108
    %v171 = vpack.c.b16 %v111, %v109
    %v172 = vpack.c.b16 %v114, %v112
    %v173 = vpack.c.b16 %v115, %v113
    %v174 = vpack.c.b16 %v118, %v116
    %v175 = vpack.c.b16 %v119, %v117
    %v176 = vpack.c.b16 %v122, %v120
    %v177 = vpack.c.b16 %v123, %v121
    %v178 = vpack.c.b16 %v126, %v124
    %v179 = vpack.c.b16 %v127, %v125
    %v180 = vpack.c.b16 %v130, %v128
    %v181 = vpack.c.b16 %v131, %v129
    %v182 = vpack.c.b16 %v134, %v132
    %v183 = vpack.c.b16 %v135, %v133
    %v184 = vpack.c.b16 %v138, %v136
    %v185 = vpack.c.b16 %v139, %v137
    %v186 = vpack.c.b16 %v142, %v140
    %v187 = vpack.c.b16 %v143, %v141
    %v188 = vpack.c.b16 %v146, %v144
    %v189 = vpack.c.b16 %v147, %v145
    %v190 = vpack.c.b16 %v150, %v148
    %v191 = vpack.c.b16 %v151, %v149
    %v192 = vpack.c.b16 %v154, %v152
    %v193 = vpack.c.b16 %v155, %v153
    %v194 = vpack.c.b16 %v158, %v156
    %v195 = vpack.c.b16 %v159, %v157
    %v196 = vpack.c.b16 %v162, %v160
    %v197 = vpack.c.b16 %v163, %v161
    %v198 = vpack.c.b16 %v166, %v164
    %v199 = vpack.c.b16 %v167, %v165
    %232 = vmatpush.bf16.msra.mxu0 %v182
    %233 = vmatpush.bf16.msra.mxu0 %v180
    %234 = vmatpush.bf16.msra.mxu0 %v178
    %235 = vmatpush.bf16.msra.mxu0 %v176
    %236 = vmatpush.bf16.msra.mxu0 %v174
    %237 = vmatpush.bf16.msra.mxu0 %v172
    %238 = vmatpush.bf16.msra.mxu0 %v170
    %239 = vmatpush.bf16.msra.mxu0 %v168
    %240 = vmatmul.bf16.gmra.mxu0 %v68
    %v241 = vpop.f32.mrf.mxu0
    %v242 = vadd.f32 %v58, %v241
    %v243 = vpop.f32.mrf.mxu0
    %v244 = vadd.f32 %v58, %v243
    %245 = vdwg.mxu0
    %246 = vmatpush.bf16.msra.mxu0 %v198
    %247 = vmatpush.bf16.msra.mxu0 %v196
    %248 = vmatpush.bf16.msra.mxu0 %v194
    %249 = vmatpush.bf16.msra.mxu0 %v192
    %250 = vmatpush.bf16.msra.mxu0 %v190
    %251 = vmatpush.bf16.msra.mxu0 %v188
    %252 = vmatpush.bf16.msra.mxu0 %v186
    %253 = vmatpush.bf16.msra.mxu0 %v184
    %254 = vmatmul.bf16.gmra.mxu0 %v69
    %v255 = vpop.f32.mrf.mxu0
    %v256 = vadd.f32 %v242, %v255
    %v257 = vpop.f32.mrf.mxu0
    %v258 = vadd.f32 %v244, %v257
    %259 = vdwg.mxu0
    %260 = vmatpush.bf16.msra.mxu0 %v183
    %261 = vmatpush.bf16.msra.mxu0 %v181
    %262 = vmatpush.bf16.msra.mxu0 %v179
    %263 = vmatpush.bf16.msra.mxu0 %v177
    %264 = vmatpush.bf16.msra.mxu0 %v175
    %265 = vmatpush.bf16.msra.mxu0 %v173
    %266 = vmatpush.bf16.msra.mxu0 %v171
    %267 = vmatpush.bf16.msra.mxu0 %v169
    %268 = vmatmul.bf16.gmra.mxu0 %v68
    %v269 = vpop.f32.mrf.mxu0
    %v270 = vadd.f32 %v59, %v269
    %v271 = vpop.f32.mrf.mxu0
    %v272 = vadd.f32 %v59, %v271
    %273 = vdwg.mxu0
    %274 = vmatpush.bf16.msra.mxu0 %v199
    %275 = vmatpush.bf16.msra.mxu0 %v197
    %276 = vmatpush.bf16.msra.mxu0 %v195
    %277 = vmatpush.bf16.msra.mxu0 %v193
    %278 = vmatpush.bf16.msra.mxu0 %v191
    %279 = vmatpush.bf16.msra.mxu0 %v189
    %280 = vmatpush.bf16.msra.mxu0 %v187
    %281 = vmatpush.bf16.msra.mxu0 %v185
    %282 = vmatmul.bf16.gmra.mxu0 %v69
    %v283 = vpop.f32.mrf.mxu0
    %v284 = vadd.f32 %v270, %v283
    %v285 = vpop.f32.mrf.mxu0
    %v286 = vadd.f32 %v272, %v285
    %287 = vdwg.mxu0
    %v288 = vxor.u32 %v256, 2147483648
    %v289 = vxor.u32 %v258, 2147483648
    %v290 = vmul.f32 %v288, 1.442695
    %v291 = vpow.pop %v290
    %v292 = vmul.f32 %v289, 1.442695
    %v293 = vpow.pop %v292
    %v294 = vadd.f32 %v291, 1.0
    %v295 = vadd.f32 %v293, 1.0
    %v296 = vrcp.pop %v294
    %v297 = vmul.f32 %v294, %v296
    %v298 = vsub.f32 1.0, %v297
    %v299 = vmul.f32 %v296, %v298
    %v300 = vadd.f32 %v296, %v299
    %vm301 = vweird.f32 %v294
    %vm302 = vweird.f32 %v296
    %vm303 = vmor %vm301, %vm302
    %v304 = vsel %vm303, %v296, %v300
    %v305 = vand.u32 2147483647, %v294
    %vm306 = vcmp.eq.f32.partialorder %v305, 8.507059e+37
    %v307 = vand.u32 %v294, 2147483648
    %v308 = vor.u32 1.1754944e-38, %v307
    %v309 = vsel %vm306, %v308, %v304
    %v310 = vmul.f32 1.0, %v309
    %v311 = vrcp.pop %v295
    %v312 = vmul.f32 %v295, %v311
    %v313 = vsub.f32 1.0, %v312
    %v314 = vmul.f32 %v311, %v313
    %v315 = vadd.f32 %v311, %v314
    %vm316 = vweird.f32 %v295
    %vm317 = vweird.f32 %v311
    %vm318 = vmor %vm316, %vm317
    %v319 = vsel %vm318, %v311, %v315
    %v320 = vand.u32 2147483647, %v295
    %vm321 = vcmp.eq.f32.partialorder %v320, 8.507059e+37
    %v322 = vand.u32 %v295, 2147483648
    %v323 = vor.u32 1.1754944e-38, %v322
    %v324 = vsel %vm321, %v323, %v319
    %v325 = vmul.f32 1.0, %v324
    %v326 = vtanh.pop %v256
    %v327 = vtanh.pop %v258
    %v328 = vxor.u32 %v284, 2147483648
    %v329 = vxor.u32 %v286, 2147483648
    %v330 = vmul.f32 %v328, 1.442695
    %v331 = vpow.pop %v330
    %v332 = vmul.f32 %v329, 1.442695
    %v333 = vpow.pop %v332
    %v334 = vadd.f32 %v331, 1.0
    %v335 = vadd.f32 %v333, 1.0
    %v336 = vrcp.pop %v334
    %v337 = vmul.f32 %v334, %v336
    %v338 = vsub.f32 1.0, %v337
    %v339 = vmul.f32 %v336, %v338
    %v340 = vadd.f32 %v336, %v339
    %vm341 = vweird.f32 %v334
    %vm342 = vweird.f32 %v336
    %vm343 = vmor %vm341, %vm342
    %v344 = vsel %vm343, %v336, %v340
    %v345 = vand.u32 2147483647, %v334
    %vm346 = vcmp.eq.f32.partialorder %v345, 8.507059e+37
    %v347 = vand.u32 %v334, 2147483648
    %v348 = vor.u32 1.1754944e-38, %v347
    %v349 = vsel %vm346, %v348, %v344
    %v350 = vmul.f32 1.0, %v349
    %v351 = vrcp.pop %v335
    %v352 = vmul.f32 %v335, %v351
    %v353 = vsub.f32 1.0, %v352
    %v354 = vmul.f32 %v351, %v353
    %v355 = vadd.f32 %v351, %v354
    %vm356 = vweird.f32 %v335
    %vm357 = vweird.f32 %v351
    %vm358 = vmor %vm356, %vm357
    %v359 = vsel %vm358, %v351, %v355
    %v360 = vand.u32 2147483647, %v335
    %vm361 = vcmp.eq.f32.partialorder %v360, 8.507059e+37
    %v362 = vand.u32 %v335, 2147483648
    %v363 = vor.u32 1.1754944e-38, %v362
    %v364 = vsel %vm361, %v363, %v359
    %v365 = vmul.f32 1.0, %v364
    %368 = vrot.lane.b32.xlu0 %v326, 64
    %v369 = vpop.permute.xlu0 %368
    %370 = vrot.lane.b32.xlu0 %v327, 64
    %v371 = vpop.permute.xlu0 %370
    %v374 = vmul.f32 %v310, %v369
    %v375 = vmul.f32 %v325, %v371
    %v376 = vtanh.pop %v374
    %v377 = vtanh.pop %v375
    %v378 = vmul.f32 %v350, %v376
    %v379 = vmul.f32 %v365, %v377
    %v380 = vpack.c.bf16 %v379, %v378
    %v381 = vld [vmem:[%s3] sm:$0xf]
    %v382 = vld [vmem:[%s3 + $0x4] sm:$0xf]
    %v383 = vld [vmem:[%s3 + $0x8] sm:$0xf]
    %v384 = vld [vmem:[%s3 + $0xc] sm:$0xf]
    %v385 = vld [vmem:[%s3 + $0x10] sm:$0xf]
    %v386 = vld [vmem:[%s3 + $0x14] sm:$0xf]
    %v387 = vld [vmem:[%s3 + $0x18] sm:$0xf]
    %v388 = vld [vmem:[%s3 + $0x1c] sm:$0xf]
    %v389 = vld [vmem:[%s4] sm:$0x1]
    %v391 = vperm.slane %v389, 0
    %v401 = vunpack.c.l.b16 %v381
    %v402 = vunpack.c.l.b16 %v382
    %v403 = vunpack.c.l.b16 %v383
    %v404 = vunpack.c.l.b16 %v384
    %v405 = vunpack.c.l.b16 %v385
    %v406 = vunpack.c.l.b16 %v386
    %v407 = vunpack.c.l.b16 %v387
    %v408 = vunpack.c.l.b16 %v388
    %v409 = vpack.c.b16 %v402, %v401
    %v410 = vpack.c.b16 %v404, %v403
    %v411 = vpack.c.b16 %v406, %v405
    %v412 = vpack.c.b16 %v408, %v407
    %vm417 = vcmask 523264
    %v419 = vsel %vm417, %v380, 0
    %421 = vmatpush.bf16.msra.mxu0 0
    %422 = vmatpush.bf16.msra.mxu0 0
    %423 = vmatpush.bf16.msra.mxu0 0
    %424 = vmatpush.bf16.msra.mxu0 0
    %425 = vmatpush.bf16.msra.mxu0 %v412
    %426 = vmatpush.bf16.msra.mxu0 %v411
    %427 = vmatpush.bf16.msra.mxu0 %v410
    %428 = vmatpush.bf16.msra.mxu0 %v409
    %429 = vmatmul.bf16.gmra.mxu0 %v419
    %v430 = vpop.f32.mrf.mxu0
    %v431 = vadd.f32 %v391, %v430
    %v432 = vpop.f32.mrf.mxu0
    %v433 = vadd.f32 %v391, %v432
    %434 = vdwg.mxu0
    %435 = vst [vmem:[#allocation2] sm:$0xff] %v431
    %436 = vst [vmem:[#allocation2 + $0x8] sm:$0xff] %v433
    // Predicated region
    $region22: #{tpu_custom_call.1} parent=1 // pred_check
      _
    $region23: #{tpu_custom_call.1} parent=1 // pred_check_branch
      %438 = sbr.rel (0) target = $region25
    $region24: #{tpu_custom_call.1} parent=1 // pred_region
      %440 = vsyncadd [#allocation3], 0
      %s441 = sshll.u32 [#allocation2], 4
      %s442 = int_to_ptr.vmem [resolvable:$true] %s441
      %s443 = sshll.u32 %s5, 4
      %s444 = int_to_ptr.hbm [resolvable:$true] %s443
      %449 = dma.vmem_to_hbm [thread:$0]  %s442, 256, %s444, [#allocation3], 128, 128, 8
    $region25: #{tpu_custom_call.1} parent=1 // pred_fallthru
      _
    // Predicated region
    $region26: #{tpu_custom_call.1} parent=1 // pred_check
      _
    $region27: #{tpu_custom_call.1} parent=1 // pred_check_branch
      %451 = sbr.rel (0) target = $region29
    $region28: #{tpu_custom_call.1} parent=1 // pred_region
      %453 = dma.done [#allocation3], 256
    $region29: #{tpu_custom_call.1} parent=1 // pred_fallthru
      _
    %454 = vsyncpa [#allocation3], 1

</llo_original>
